<compile_context>
chip_gen: v5e
topology: v5e:2x2
jax: 0.10.0
libtpu: 0.0.40
codegen_flags: <defaults>
</compile_context>

<pallas_src>
import numpy as np
import jax
import jax.numpy as jnp
from jax.experimental import pallas as pl
from jax.experimental.pallas import tpu as pltpu

_LANE = 128
_SUBLANE = 8


def _round_up(v, m):
    return ((v + m - 1) // m) * m


def _soft_tree_kernel(x_ref, wt_ref, b_ref, right_ref, left_ref, phi_ref, out_ref):
    x = x_ref[...]                                                    # (TB, D_pad)

    # Gating logits for every internal node in one MXU matmul.
    logits = jnp.dot(x, wt_ref[...], preferred_element_type=jnp.float32) + b_ref[...]

    # Stable log-sigmoid pair from a single softplus (EUP exp + log, no infs).
    softplus = jnp.maximum(logits, 0.0) + jnp.log(1.0 + jnp.exp(-jnp.abs(logits)))
    log_p = logits - softplus          # log sigmoid(z)      -> "went right"
    log_q = -softplus                  # log (1 - sigmoid(z)) -> "went left"

    # Per-leaf log path-probability: sum ancestor log-gates via two MXU matmuls
    # against static 0/1 routing matrices (heap-order rows, leaf-order columns).
    log_paths = (jnp.dot(log_p, right_ref[...], preferred_element_type=jnp.float32)
                 + jnp.dot(log_q, left_ref[...], preferred_element_type=jnp.float32))
    paths = jnp.exp(log_paths)                                        # (TB, L_pad)

    # pred = paths @ phi. Padded leaves have zero phi rows -> contribute nothing.
    out_ref[...] = jnp.dot(paths, phi_ref[...], preferred_element_type=jnp.float32)


def soft_decision_tree_forward(x, w, b, phi, *, depth, batch_block=256):
    """x: (B, D); w: (N_int, D) heap order; b: (1, N_int); phi: (N_leaf, P)."""
    x = jnp.asarray(x, jnp.float32)
    w = jnp.asarray(w, jnp.float32)
    b = jnp.asarray(b, jnp.float32).reshape(1, -1)
    phi = jnp.asarray(phi, jnp.float32)

    B, D = x.shape
    n_internal = w.shape[0]
    n_leaves, phi_numel = phi.shape
    assert n_internal == (1 << depth) - 1 and n_leaves == (1 << depth)

    # Lane-dense padded sizes (zero padding is semantically inert, see below).
    d_pad = _round_up(D, _LANE)
    n_pad = _round_up(n_internal, _LANE)
    l_pad = _round_up(n_leaves, _LANE)
    p_pad = _round_up(phi_numel, _LANE)

    # Batch tile: sublane-aligned; weights resident, x/out stream + double-buffer.
    tb = _round_up(min(batch_block, _round_up(B, _SUBLANE)), _SUBLANE)
    b_rows = _round_up(B, tb)

    x_p = jnp.zeros((b_rows, d_pad), jnp.float32).at[:B, :D].set(x)
    wt_p = jnp.zeros((d_pad, n_pad), jnp.float32).at[:D, :n_internal].set(w.T)
    b_p = jnp.zeros((1, n_pad), jnp.float32).at[:, :n_internal].set(b)
    phi_p = jnp.zeros((l_pad, p_pad), jnp.float32).at[:n_leaves, :phi_numel].set(phi)

    # Static ancestor -> leaf routing matrices. Row = heap node index, col = leaf
    # (left-to-right). right[n, l] = 1 iff leaf l turns right at node n, etc.
    right_np = np.zeros((n_pad, l_pad), np.float32)
    left_np = np.zeros((n_pad, l_pad), np.float32)
    for leaf in range(n_leaves):
        for k in range(depth):
            node = (1 << k) - 1 + (leaf >> (depth - k))
            if (leaf >> (depth - 1 - k)) & 1:
                right_np[node, leaf] = 1.0
            else:
                left_np[node, leaf] = 1.0
    right_m = jnp.asarray(right_np)
    left_m = jnp.asarray(left_np)

    grid = (b_rows // tb,)
    grid_spec = pltpu.PrefetchScalarGridSpec(
        num_scalar_prefetch=0,
        grid=grid,
        in_specs=[
            pl.BlockSpec((tb, d_pad), lambda i: (i, 0)),      # x: streamed
            pl.BlockSpec((d_pad, n_pad), lambda i: (0, 0)),   # W^T: resident
            pl.BlockSpec((1, n_pad), lambda i: (0, 0)),       # b: resident
            pl.BlockSpec((n_pad, l_pad), lambda i: (0, 0)),   # right routing
            pl.BlockSpec((n_pad, l_pad), lambda i: (0, 0)),   # left routing
            pl.BlockSpec((l_pad, p_pad), lambda i: (0, 0)),   # phi: resident
        ],
        out_specs=pl.BlockSpec((tb, p_pad), lambda i: (i, 0)),
    )

    flops = 2 * b_rows * (d_pad * n_pad + 2 * n_pad * l_pad + l_pad * p_pad)
    transcendentals = b_rows * (2 * n_pad + l_pad)
    bytes_accessed = 4 * (x_p.size + wt_p.size + b_p.size + right_m.size
                          + left_m.size + phi_p.size + b_rows * p_pad)

    out = pl.pallas_call(
        _soft_tree_kernel,
        out_shape=jax.ShapeDtypeStruct((b_rows, p_pad), jnp.float32),
        grid_spec=grid_spec,
        compiler_params=pltpu.CompilerParams(
            dimension_semantics=("parallel",),
        ),
        cost_estimate=pl.CostEstimate(
            flops=flops,
            transcendentals=transcendentals,
            bytes_accessed=bytes_accessed,
        ),
    )(x_p, wt_p, b_p, right_m, left_m, phi_p)

    return out[:B, :phi_numel]


def reference_forward(x, w, b, phi, *, depth):
    """Pure-JAX reference mirroring the PyTorch recursion (direct products)."""
    p = jax.nn.sigmoid(x @ w.T + b)                  # (B, N_int), heap order
    B = x.shape[0]
    paths = [jnp.ones((B, 1), jnp.float32)]
    off = 0
    for k in range(depth):
        n_k = 1 << k
        new_paths = []
        for i in range(n_k):
            pi = p[:, off + i: off + i + 1]
            new_paths.append(paths[i] * (1.0 - pi))   # left child
            new_paths.append(paths[i] * pi)           # right child
        paths = new_paths
        off += n_k
    pred = jnp.zeros((B, phi.shape[1]), jnp.float32)
    for j in range(1 << depth):
        pred = pred + paths[j] * phi[j: j + 1, :]
    return pred


if __name__ == "__main__":
    # Small, deterministic configuration.
    depth = 3                 # -> 7 internal nodes, 8 leaves
    input_dim = 32
    phi_numel = 4
    batch = 16                # with batch_block=8 -> 2 grid steps (pipelined)

    n_internal = (1 << depth) - 1
    n_leaves = 1 << depth

    key = jax.random.PRNGKey(0)
    kx, kw, kb, kphi = jax.random.split(key, 4)

    x = jax.random.normal(kx, (batch, input_dim), dtype=jnp.float32)

    # Internal-node dense layers: mimic nn.Linear(input_dim, 1) default init
    # (uniform in +-1/sqrt(input_dim)), packed level-order (heap order).
    bound = 1.0 / (input_dim ** 0.5)
    w = jax.random.uniform(kw, (n_internal, input_dim),
                           minval=-bound, maxval=bound, dtype=jnp.float32)
    b = jax.random.uniform(kb, (1, n_internal),
                           minval=-bound, maxval=bound, dtype=jnp.float32)
    # Leaf phis: randn, packed left-to-right.
    phi = jax.random.normal(kphi, (n_leaves, phi_numel), dtype=jnp.float32)

    out = soft_decision_tree_forward(x, w, b, phi, depth=depth, batch_block=8)
    out = jax.block_until_ready(out)

    ref = reference_forward(x, w, b, phi, depth=depth)
    assert out.shape == (batch, phi_numel)
    assert jnp.allclose(out, ref, atol=1e-4, rtol=1e-4), (
        float(jnp.max(jnp.abs(out - ref))))

    print("KERNEL_OK")
</pallas_src>

<mosaic_0001>
module attributes {stable_mosaic.version = 11 : i64} {
  func.func @_soft_tree_kernel(%arg0: i32, %arg1: memref<8x128xf32, #tpu.memory_space<vmem>>, %arg2: memref<128x128xf32, #tpu.memory_space<vmem>>, %arg3: memref<1x128xf32, #tpu.memory_space<vmem>>, %arg4: memref<128x128xf32, #tpu.memory_space<vmem>>, %arg5: memref<128x128xf32, #tpu.memory_space<vmem>>, %arg6: memref<128x128xf32, #tpu.memory_space<vmem>>, %arg7: memref<8x128xf32, #tpu.memory_space<vmem>>) attributes {dimension_semantics = [#tpu.dimension_semantics<parallel>], iteration_bounds = array<i64: 2>, scalar_prefetch = 0 : i64, scratch_operands = 0 : i64, tpu.core_type = #tpu.core_type<tc>, window_params = [{transform_indices = @transform_0, window_bounds = array<i64: 8, 128>}, {pipeline_mode = #tpu.pipeline_mode<synchronous>, transform_indices = @transform_1, window_bounds = array<i64: 128, 128>}, {pipeline_mode = #tpu.pipeline_mode<synchronous>, transform_indices = @transform_2, window_bounds = array<i64: 1, 128>}, {pipeline_mode = #tpu.pipeline_mode<synchronous>, transform_indices = @transform_3, window_bounds = array<i64: 128, 128>}, {pipeline_mode = #tpu.pipeline_mode<synchronous>, transform_indices = @transform_4, window_bounds = array<i64: 128, 128>}, {pipeline_mode = #tpu.pipeline_mode<synchronous>, transform_indices = @transform_5, window_bounds = array<i64: 128, 128>}, {transform_indices = @transform_6, window_bounds = array<i64: 8, 128>}]} {
    %c0 = arith.constant 0 : index
    %c0_0 = arith.constant 0 : index
    %0 = vector.load %arg1[%c0, %c0_0] : memref<8x128xf32, #tpu.memory_space<vmem>>, vector<8x128xf32>
    %c0_1 = arith.constant 0 : index
    %c0_2 = arith.constant 0 : index
    %1 = vector.load %arg2[%c0_1, %c0_2] : memref<128x128xf32, #tpu.memory_space<vmem>>, vector<128x128xf32>
    %cst = arith.constant dense<0.000000e+00> : vector<8x128xf32>
    %2 = tpu.matmul %0, %1, %cst {dimension_numbers = #tpu.dot_dimension_numbers<[1], [0], [0], [1], [0, 0, 1, 1], [], []>} : vector<8x128xf32>, vector<128x128xf32>, vector<8x128xf32> -> vector<8x128xf32>
    %c0_3 = arith.constant 0 : index
    %c0_4 = arith.constant 0 : index
    %3 = vector.load %arg3[%c0_3, %c0_4] : memref<1x128xf32, #tpu.memory_space<vmem>>, vector<1x128xf32>
    %4 = vector.broadcast %3 : vector<1x128xf32> to vector<8x128xf32>
    %5 = arith.addf %2, %4 : vector<8x128xf32>
    %cst_5 = arith.constant 0.000000e+00 : f32
    %6 = vector.broadcast %cst_5 : f32 to vector<8x128xf32>
    %7 = arith.maximumf %5, %6 : vector<8x128xf32>
    %8 = math.absf %5 : vector<8x128xf32>
    %cst_6 = arith.constant 0.000000e+00 : f32
    %9 = vector.broadcast %cst_6 : f32 to vector<8x128xf32>
    %10 = arith.subf %9, %8 : vector<8x128xf32>
    %11 = math.exp %10 : vector<8x128xf32>
    %cst_7 = arith.constant 1.000000e+00 : f32
    %12 = vector.broadcast %cst_7 : f32 to vector<8x128xf32>
    %13 = arith.addf %12, %11 : vector<8x128xf32>
    %14 = math.log %13 : vector<8x128xf32>
    %15 = arith.addf %7, %14 : vector<8x128xf32>
    %16 = arith.subf %5, %15 : vector<8x128xf32>
    %cst_8 = arith.constant 0.000000e+00 : f32
    %17 = vector.broadcast %cst_8 : f32 to vector<8x128xf32>
    %18 = arith.subf %17, %15 : vector<8x128xf32>
    %c0_9 = arith.constant 0 : index
    %c0_10 = arith.constant 0 : index
    %19 = vector.load %arg4[%c0_9, %c0_10] : memref<128x128xf32, #tpu.memory_space<vmem>>, vector<128x128xf32>
    %cst_11 = arith.constant dense<0.000000e+00> : vector<8x128xf32>
    %20 = tpu.matmul %16, %19, %cst_11 {dimension_numbers = #tpu.dot_dimension_numbers<[1], [0], [0], [1], [0, 0, 1, 1], [], []>} : vector<8x128xf32>, vector<128x128xf32>, vector<8x128xf32> -> vector<8x128xf32>
    %c0_12 = arith.constant 0 : index
    %c0_13 = arith.constant 0 : index
    %21 = vector.load %arg5[%c0_12, %c0_13] : memref<128x128xf32, #tpu.memory_space<vmem>>, vector<128x128xf32>
    %cst_14 = arith.constant dense<0.000000e+00> : vector<8x128xf32>
    %22 = tpu.matmul %18, %21, %cst_14 {dimension_numbers = #tpu.dot_dimension_numbers<[1], [0], [0], [1], [0, 0, 1, 1], [], []>} : vector<8x128xf32>, vector<128x128xf32>, vector<8x128xf32> -> vector<8x128xf32>
    %23 = arith.addf %20, %22 : vector<8x128xf32>
    %24 = math.exp %23 : vector<8x128xf32>
    %c0_15 = arith.constant 0 : index
    %c0_16 = arith.constant 0 : index
    %25 = vector.load %arg6[%c0_15, %c0_16] : memref<128x128xf32, #tpu.memory_space<vmem>>, vector<128x128xf32>
    %cst_17 = arith.constant dense<0.000000e+00> : vector<8x128xf32>
    %26 = tpu.matmul %24, %25, %cst_17 {dimension_numbers = #tpu.dot_dimension_numbers<[1], [0], [0], [1], [0, 0, 1, 1], [], []>} : vector<8x128xf32>, vector<128x128xf32>, vector<8x128xf32> -> vector<8x128xf32>
    %c0_18 = arith.constant 0 : index
    %c0_19 = arith.constant 0 : index
    %27 = vector.load %arg7[%c0_18, %c0_19] : memref<8x128xf32, #tpu.memory_space<vmem>>, vector<8x128xf32>
    tpu.vector_store %arg7[%c0_18, %c0_19], %26 {strides = array<i32>} : memref<8x128xf32, #tpu.memory_space<vmem>>, vector<8x128xf32>,
    return
  }
  func.func @transform_0(%arg0: i32) -> (i32, i32) {
    %c0_i32 = arith.constant 0 : i32
    %c0_i32_0 = arith.constant 0 : i32
    return %arg0, %c0_i32 : i32, i32
  }
  func.func @transform_1(%arg0: i32) -> (i32, i32) {
    %c0_i32 = arith.constant 0 : i32
    %c0_i32_0 = arith.constant 0 : i32
    %c0_i32_1 = arith.constant 0 : i32
    return %c0_i32, %c0_i32_0 : i32, i32
  }
  func.func @transform_2(%arg0: i32) -> (i32, i32) {
    %c0_i32 = arith.constant 0 : i32
    %c0_i32_0 = arith.constant 0 : i32
    %c0_i32_1 = arith.constant 0 : i32
    return %c0_i32, %c0_i32_0 : i32, i32
  }
  func.func @transform_3(%arg0: i32) -> (i32, i32) {
    %c0_i32 = arith.constant 0 : i32
    %c0_i32_0 = arith.constant 0 : i32
    %c0_i32_1 = arith.constant 0 : i32
    return %c0_i32, %c0_i32_0 : i32, i32
  }
  func.func @transform_4(%arg0: i32) -> (i32, i32) {
    %c0_i32 = arith.constant 0 : i32
    %c0_i32_0 = arith.constant 0 : i32
    %c0_i32_1 = arith.constant 0 : i32
    return %c0_i32, %c0_i32_0 : i32, i32
  }
  func.func @transform_5(%arg0: i32) -> (i32, i32) {
    %c0_i32 = arith.constant 0 : i32
    %c0_i32_0 = arith.constant 0 : i32
    %c0_i32_1 = arith.constant 0 : i32
    return %c0_i32, %c0_i32_0 : i32, i32
  }
  func.func @transform_6(%arg0: i32) -> (i32, i32) {
    %c0_i32 = arith.constant 0 : i32
    %c0_i32_0 = arith.constant 0 : i32
    return %arg0, %c0_i32 : i32, i32
  }
}

</mosaic_0001>

<llo_original>
// kernel: tpu_custom_call.1
$region0: #{tpu_custom_call.1}
  #allocation0 [shape = 'u32[]', space=smem, size = 0x4, offset = 0x4, fixed_abs, tag = 'smem constant byte address 0x4 - core index']
  #allocation1 [shape = 'u32[72,128]{1,0:T(1,128)}', space=vmem, size = 0x9000, scoped, tag = 'internal scratch']
  %s0 = inlined_call_operand.hbm [shape: f32[16,128], index: 0, kind: input, shape index: {}]
  %s1 = inlined_call_operand.hbm [shape: f32[128,128], index: 1, kind: input, shape index: {}]
  %s2 = inlined_call_operand.vmem [shape: f32[1,128], index: 2, kind: input, shape index: {}]
  %s3 = inlined_call_operand.hbm [shape: f32[128,128], index: 3, kind: input, shape index: {}]
  %s4 = inlined_call_operand.hbm [shape: f32[128,128], index: 4, kind: input, shape index: {}]
  %s5 = inlined_call_operand.hbm [shape: f32[128,128], index: 5, kind: input, shape index: {}]
  %s6 = inlined_call_operand.hbm [shape: f32[16,128], index: 6, kind: output, shape index: {}]
  %s7 = sld [smem:[#allocation0]]
  $region77: #{tpu_custom_call.1} parent=0
    _
  %s9 = ssub.s32 1, %s7
  %s10 = scalar_select 0, %s9, %s7
  $region1: #{tpu_custom_call.1} parent=0
    #allocation2 [shape = 'u8[8192]{0}', space=vmem, size = 0x2000, scoped, tag = 'input window, operand 0']
    #allocation3 [shape = 's32[2]{0}', space=sflag, size = 0x8, scoped, tag = 'scoped memory for tpu_custom_call.1']
    #allocation4 [shape = 's32[2]{0}', space=sflag, size = 0x8, scoped, tag = 'scoped memory for tpu_custom_call.1']
    #allocation5 [shape = 'u8[65536]{0}', space=vmem, size = 0x10000, scoped, tag = 'input window, operand 1, single buffered']
    #allocation6 [shape = 's32[1]{0}', space=sflag, size = 0x4, scoped, tag = 'scoped memory for tpu_custom_call.1']
    #allocation7 [shape = 'u8[65536]{0}', space=vmem, size = 0x10000, scoped, tag = 'input window, operand 3, single buffered']
    #allocation8 [shape = 'u8[65536]{0}', space=vmem, size = 0x10000, scoped, tag = 'input window, operand 4, single buffered']
    #allocation9 [shape = 's32[1]{0}', space=sflag, size = 0x4, scoped, tag = 'scoped memory for tpu_custom_call.1']
    #allocation10 [shape = 'u8[65536]{0}', space=vmem, size = 0x10000, scoped, tag = 'input window, operand 5, single buffered']
    #allocation11 [shape = 'u8[8192]{0}', space=vmem, size = 0x2000, scoped, tag = 'output window, operand 0']
    %11 = vsyncpa [#allocation3], 0
    %s12 = scalar_lea.sflag [#allocation3], 1
    %13 = vsyncpa %s12, 0
    %14 = vsyncpa [#allocation6], 0
    %15 = vsyncpa [#allocation9], 0
    %16 = vsyncpa [#allocation4], 0
    %s17 = scalar_lea.sflag [#allocation4], 1
    %18 = vsyncpa %s17, 0
    loop: start=0, step=1, limit=4
    $region2: #{tpu_custom_call.1} parent=1 // loop_pre_header
      _
    $region3: #{tpu_custom_call.1} parent=1 // loop_header
      %s20 = sphi 0, %s24
      %p21 = scmp.ge.s32.totalorder %s20, 4
      %s30 = sphi 0, %s32
      %s33 = sphi 0, %s30
      %s34 = sphi 0, %s33
      %s50 = sphi 0, %s34
      %s54 = sphi 0, %s54
      %s56 = sphi 0, %s54
      %s57 = sphi 0, %s56
      %s71 = sphi 0, %s57
      %s75 = sphi 0, %s75
      %s77 = sphi 0, %s75
      %s78 = sphi 0, %s77
      %s92 = sphi 0, %s78
      %s96 = sphi 0, %s96
      %s98 = sphi 0, %s96
      %s99 = sphi 0, %s98
      %s113 = sphi 0, %s99
      %s117 = sphi 0, %s117
      %s119 = sphi 0, %s117
      %s120 = sphi 0, %s119
      %s134 = sphi 0, %s120
      %s138 = sphi 0, %s138
      %s140 = sphi 0, %s138
      %s141 = sphi 0, %s140
      %s155 = sphi 0, %s141
      %s161 = sphi 0, %s163
      %s164 = sphi 0, %s161
      %s165 = sphi 0, %s164
      %s181 = sphi 0, %s165
    $region4: #{tpu_custom_call.1} parent=1 // loop_header_branch
      %23 = sbr.rel (%p21) target = $region8
    $region5: #{tpu_custom_call.1} parent=1 // loop_body
      %s25 = ssub.s32 %s20, 1
      %s26 = ssub.s32 %s20, 2
      %s27 = sadd.s32 %s20, 1
      %s28 = ssub.s32 %s20, %s27
      %p29 = scmp.eq.s32.totalorder %s28, 0
      %s31 = sadd.s32 %s30, 1
      %s32 = scalar_select %p29, %s30, %s31
      %p35 = pneg %p29
      %p36 = scmp.eq.s32.totalorder %s20, 1
      %p37 = por %p35, %p36
      %p38 = scmp.ne.s32.totalorder %s30, %s33
      %p39 = scmp.eq.s32.totalorder %s20, 0
      %p40 = por %p38, %p39
      %p41 = scmp.ne.s32.totalorder %s30, %s33
      %p42 = scmp.eq.s32.totalorder %s25, 1
      %p43 = por %p41, %p42
      %p44 = scmp.ne.s32.totalorder %s33, %s34
      %p45 = scmp.eq.s32.totalorder %s25, 0
      %p46 = por %p44, %p45
      %p47 = scmp.ne.s32.totalorder %s33, %s34
      %p48 = scmp.eq.s32.totalorder %s26, 1
      %p49 = por %p47, %p48
      %p51 = scmp.ne.s32.totalorder %s34, %s50
      %p52 = scmp.eq.s32.totalorder %s26, 0
      %p53 = por %p51, %p52
      %s55 = sadd.s32 %s54, 1
      %p58 = scmp.eq.s32.totalorder %s20, 1
      %p59 = scmp.ne.s32.totalorder %s54, %s56
      %p60 = scmp.eq.s32.totalorder %s20, 0
      %p61 = por %p59, %p60
      %p62 = scmp.ne.s32.totalorder %s54, %s56
      %p63 = scmp.eq.s32.totalorder %s25, 1
      %p64 = por %p62, %p63
      %p65 = scmp.ne.s32.totalorder %s56, %s57
      %p66 = scmp.eq.s32.totalorder %s25, 0
      %p67 = por %p65, %p66
      %p68 = scmp.ne.s32.totalorder %s56, %s57
      %p69 = scmp.eq.s32.totalorder %s26, 1
      %p70 = por %p68, %p69
      %p72 = scmp.ne.s32.totalorder %s57, %s71
      %p73 = scmp.eq.s32.totalorder %s26, 0
      %p74 = por %p72, %p73
      %s76 = sadd.s32 %s75, 1
      %p79 = scmp.eq.s32.totalorder %s20, 1
      %p80 = scmp.ne.s32.totalorder %s75, %s77
      %p81 = scmp.eq.s32.totalorder %s20, 0
      %p82 = por %p80, %p81
      %p83 = scmp.ne.s32.totalorder %s75, %s77
      %p84 = scmp.eq.s32.totalorder %s25, 1
      %p85 = por %p83, %p84
      %p86 = scmp.ne.s32.totalorder %s77, %s78
      %p87 = scmp.eq.s32.totalorder %s25, 0
      %p88 = por %p86, %p87
      %p89 = scmp.ne.s32.totalorder %s77, %s78
      %p90 = scmp.eq.s32.totalorder %s26, 1
      %p91 = por %p89, %p90
      %p93 = scmp.ne.s32.totalorder %s78, %s92
      %p94 = scmp.eq.s32.totalorder %s26, 0
      %p95 = por %p93, %p94
      %s97 = sadd.s32 %s96, 1
      %p100 = scmp.eq.s32.totalorder %s20, 1
      %p101 = scmp.ne.s32.totalorder %s96, %s98
      %p102 = scmp.eq.s32.totalorder %s20, 0
      %p103 = por %p101, %p102
      %p104 = scmp.ne.s32.totalorder %s96, %s98
      %p105 = scmp.eq.s32.totalorder %s25, 1
      %p106 = por %p104, %p105
      %p107 = scmp.ne.s32.totalorder %s98, %s99
      %p108 = scmp.eq.s32.totalorder %s25, 0
      %p109 = por %p107, %p108
      %p110 = scmp.ne.s32.totalorder %s98, %s99
      %p111 = scmp.eq.s32.totalorder %s26, 1
      %p112 = por %p110, %p111
      %p114 = scmp.ne.s32.totalorder %s99, %s113
      %p115 = scmp.eq.s32.totalorder %s26, 0
      %p116 = por %p114, %p115
      %s118 = sadd.s32 %s117, 1
      %p121 = scmp.eq.s32.totalorder %s20, 1
      %p122 = scmp.ne.s32.totalorder %s117, %s119
      %p123 = scmp.eq.s32.totalorder %s20, 0
      %p124 = por %p122, %p123
      %p125 = scmp.ne.s32.totalorder %s117, %s119
      %p126 = scmp.eq.s32.totalorder %s25, 1
      %p127 = por %p125, %p126
      %p128 = scmp.ne.s32.totalorder %s119, %s120
      %p129 = scmp.eq.s32.totalorder %s25, 0
      %p130 = por %p128, %p129
      %p131 = scmp.ne.s32.totalorder %s119, %s120
      %p132 = scmp.eq.s32.totalorder %s26, 1
      %p133 = por %p131, %p132
      %p135 = scmp.ne.s32.totalorder %s120, %s134
      %p136 = scmp.eq.s32.totalorder %s26, 0
      %p137 = por %p135, %p136
      %s139 = sadd.s32 %s138, 1
      %p142 = scmp.eq.s32.totalorder %s20, 1
      %p143 = scmp.ne.s32.totalorder %s138, %s140
      %p144 = scmp.eq.s32.totalorder %s20, 0
      %p145 = por %p143, %p144
      %p146 = scmp.ne.s32.totalorder %s138, %s140
      %p147 = scmp.eq.s32.totalorder %s25, 1
      %p148 = por %p146, %p147
      %p149 = scmp.ne.s32.totalorder %s140, %s141
      %p150 = scmp.eq.s32.totalorder %s25, 0
      %p151 = por %p149, %p150
      %p152 = scmp.ne.s32.totalorder %s140, %s141
      %p153 = scmp.eq.s32.totalorder %s26, 1
      %p154 = por %p152, %p153
      %p156 = scmp.ne.s32.totalorder %s141, %s155
      %p157 = scmp.eq.s32.totalorder %s26, 0
      %p158 = por %p156, %p157
      %s159 = ssub.s32 %s20, %s27
      %p160 = scmp.eq.s32.totalorder %s159, 0
      %s162 = sadd.s32 %s161, 1
      %s163 = scalar_select %p160, %s161, %s162
      %p166 = pneg %p160
      %p167 = scmp.eq.s32.totalorder %s20, 1
      %p168 = por %p166, %p167
      %p169 = scmp.ne.s32.totalorder %s161, %s164
      %p170 = scmp.eq.s32.totalorder %s20, 0
      %p171 = por %p169, %p170
      %p172 = scmp.ne.s32.totalorder %s161, %s164
      %p173 = scmp.eq.s32.totalorder %s25, 1
      %p174 = por %p172, %p173
      %p175 = scmp.ne.s32.totalorder %s164, %s165
      %p176 = scmp.eq.s32.totalorder %s25, 0
      %p177 = por %p175, %p176
      %p178 = scmp.ne.s32.totalorder %s164, %s165
      %p179 = scmp.eq.s32.totalorder %s26, 1
      %p180 = por %p178, %p179
      %p182 = scmp.ne.s32.totalorder %s165, %s181
      %p183 = scmp.eq.s32.totalorder %s26, 0
      %p184 = por %p182, %p183
      %p185 = scmp.le.s32.totalorder 1, %s20
      %p186 = scmp.lt.s32.totalorder %s20, 3
      %p187 = pnand %p185, %p186
      %p188 = pneg %p187
      // Predicated region
      $region9: #{tpu_custom_call.1} parent=5 // pred_check
        _
      $region10: #{tpu_custom_call.1} parent=5 // pred_check_branch
        %190 = sbr.rel (%p187) target = $region12
      $region11: #{tpu_custom_call.1} parent=5 // pred_region
        %s191 = ssub.s32 %s20, 1
        // Predicated region
        $region13: #{tpu_custom_call.1} parent=11 // pred_check
          %p192 = pneg %p67
        $region14: #{tpu_custom_call.1} parent=11 // pred_check_branch
          %194 = sbr.rel (%p192) target = $region16
        $region15: #{tpu_custom_call.1} parent=11 // pred_region
          %196 = vsyncadd [#allocation6], 0
          %s197 = sshll.u32 %s1, 4
          %s198 = int_to_ptr.hbm [resolvable:$true] %s197
          %s199 = sshll.u32 [#allocation5], 4
          %s200 = int_to_ptr.vmem [resolvable:$true] %s199
          %205 = dma.hbm_to_vmem [thread:$0]  %s198, 2048, %s200, [#allocation6], 128, 128, 8
        $region16: #{tpu_custom_call.1} parent=11 // pred_fallthru
          _
        // Predicated region
        $region17: #{tpu_custom_call.1} parent=11 // pred_check
          %p206 = pneg %p88
        $region18: #{tpu_custom_call.1} parent=11 // pred_check_branch
          %208 = sbr.rel (%p206) target = $region20
        $region19: #{tpu_custom_call.1} parent=11 // pred_region
          _
        $region20: #{tpu_custom_call.1} parent=11 // pred_fallthru
          _
        // Predicated region
        $region21: #{tpu_custom_call.1} parent=11 // pred_check
          %p209 = pneg %p109
        $region22: #{tpu_custom_call.1} parent=11 // pred_check_branch
          %211 = sbr.rel (%p209) target = $region24
        $region23: #{tpu_custom_call.1} parent=11 // pred_region
          %213 = vsyncadd [#allocation6], 0
          %s214 = sshll.u32 %s3, 4
          %s215 = int_to_ptr.hbm [resolvable:$true] %s214
          %s216 = sshll.u32 [#allocation7], 4
          %s217 = int_to_ptr.vmem [resolvable:$true] %s216
          %222 = dma.hbm_to_vmem [thread:$0]  %s215, 2048, %s217, [#allocation6], 128, 128, 8
        $region24: #{tpu_custom_call.1} parent=11 // pred_fallthru
          _
        // Predicated region
        $region25: #{tpu_custom_call.1} parent=11 // pred_check
          %p223 = pneg %p130
        $region26: #{tpu_custom_call.1} parent=11 // pred_check_branch
          %225 = sbr.rel (%p223) target = $region28
        $region27: #{tpu_custom_call.1} parent=11 // pred_region
          %227 = vsyncadd [#allocation9], 0
          %s228 = sshll.u32 %s4, 4
          %s229 = int_to_ptr.hbm [resolvable:$true] %s228
          %s230 = sshll.u32 [#allocation8], 4
          %s231 = int_to_ptr.vmem [resolvable:$true] %s230
          %236 = dma.hbm_to_vmem [thread:$0]  %s229, 2048, %s231, [#allocation9], 128, 128, 8
        $region28: #{tpu_custom_call.1} parent=11 // pred_fallthru
          _
        // Predicated region
        $region29: #{tpu_custom_call.1} parent=11 // pred_check
          %p237 = pneg %p151
        $region30: #{tpu_custom_call.1} parent=11 // pred_check_branch
          %239 = sbr.rel (%p237) target = $region32
        $region31: #{tpu_custom_call.1} parent=11 // pred_region
          %241 = vsyncadd [#allocation9], 0
          %s242 = sshll.u32 %s5, 4
          %s243 = int_to_ptr.hbm [resolvable:$true] %s242
          %s244 = sshll.u32 [#allocation10], 4
          %s245 = int_to_ptr.vmem [resolvable:$true] %s244
          %250 = dma.hbm_to_vmem [thread:$0]  %s243, 2048, %s245, [#allocation9], 128, 128, 8
        $region32: #{tpu_custom_call.1} parent=11 // pred_fallthru
          _
      $region12: #{tpu_custom_call.1} parent=5 // pred_fallthru
        _
      %p251 = scmp.lt.s32.totalorder %s20, 2
      // Predicated region
      $region33: #{tpu_custom_call.1} parent=5 // pred_check
        %p252 = pneg %p251
      $region34: #{tpu_custom_call.1} parent=5 // pred_check_branch
        %254 = sbr.rel (%p252) target = $region36
      $region35: #{tpu_custom_call.1} parent=5 // pred_region
        // Predicated region
        $region37: #{tpu_custom_call.1} parent=35 // pred_check
          %p255 = pneg %p40
        $region38: #{tpu_custom_call.1} parent=35 // pred_check_branch
          %257 = sbr.rel (%p255) target = $region40
        $region39: #{tpu_custom_call.1} parent=35 // pred_region
          %s258 = sand.u32 %s30, 1
          %s259 = scalar_lea.sflag [#allocation3], %s258
          %s260 = sand.u32 %s30, 1
          %s261 = smul.addr %s260, 8
          %s262 = scalar_lea.vmem [#allocation2], %s261
          %264 = vsyncadd %s259, 0
          %s265 = smul.addr %s20, 8
          %s266 = scalar_lea.hbm %s0, %s265
          %s268 = sshll.u32 %s266, 4
          %s269 = int_to_ptr.hbm [resolvable:$true] %s268
          %s270 = sshll.u32 %s262, 4
          %s271 = int_to_ptr.vmem [resolvable:$true] %s270
          %273 = dma.hbm_to_vmem [thread:$0]  %s269, 128, %s271, %s259
        $region40: #{tpu_custom_call.1} parent=35 // pred_fallthru
          _
      $region36: #{tpu_custom_call.1} parent=5 // pred_fallthru
        _
      %p274 = scmp.le.s32.totalorder 1, %s20
      %p275 = scmp.lt.s32.totalorder %s20, 3
      %p276 = pnand %p274, %p275
      %p277 = pneg %p276
      // Predicated region
      $region41: #{tpu_custom_call.1} parent=5 // pred_check
        _
      $region42: #{tpu_custom_call.1} parent=5 // pred_check_branch
        %279 = sbr.rel (%p276) target = $region44
      $region43: #{tpu_custom_call.1} parent=5 // pred_region
        %s280 = ssub.s32 %s20, 1
        %s281 = sand.u32 %s33, 1
        %s282 = scalar_lea.sflag [#allocation3], %s281
        %s283 = sand.u32 %s33, 1
        %s284 = smul.addr %s283, 8
        %s285 = scalar_lea.vmem [#allocation2], %s284
        // Predicated region
        $region45: #{tpu_custom_call.1} parent=43 // pred_check
          %p286 = pneg %p46
        $region46: #{tpu_custom_call.1} parent=43 // pred_check_branch
          %288 = sbr.rel (%p286) target = $region48
        $region47: #{tpu_custom_call.1} parent=43 // pred_region
          %290 = dma.done %s282, 128
        $region48: #{tpu_custom_call.1} parent=43 // pred_fallthru
          _
        // Predicated region
        $region49: #{tpu_custom_call.1} parent=43 // pred_check
          %p291 = pneg %p67
        $region50: #{tpu_custom_call.1} parent=43 // pred_check_branch
          %293 = sbr.rel (%p291) target = $region52
        $region51: #{tpu_custom_call.1} parent=43 // pred_region
          %295 = dma.done [#allocation6], 2048
        $region52: #{tpu_custom_call.1} parent=43 // pred_fallthru
          _
        // Predicated region
        $region53: #{tpu_custom_call.1} parent=43 // pred_check
          %p296 = pneg %p109
        $region54: #{tpu_custom_call.1} parent=43 // pred_check_branch
          %298 = sbr.rel (%p296) target = $region56
        $region55: #{tpu_custom_call.1} parent=43 // pred_region
          %300 = dma.done [#allocation6], 2048
        $region56: #{tpu_custom_call.1} parent=43 // pred_fallthru
          _
        // Predicated region
        $region57: #{tpu_custom_call.1} parent=43 // pred_check
          %p301 = pneg %p130
        $region58: #{tpu_custom_call.1} parent=43 // pred_check_branch
          %303 = sbr.rel (%p301) target = $region60
        $region59: #{tpu_custom_call.1} parent=43 // pred_region
          %305 = dma.done [#allocation9], 2048
        $region60: #{tpu_custom_call.1} parent=43 // pred_fallthru
          _
        // Predicated region
        $region61: #{tpu_custom_call.1} parent=43 // pred_check
          %p306 = pneg %p151
        $region62: #{tpu_custom_call.1} parent=43 // pred_check_branch
          %308 = sbr.rel (%p306) target = $region64
        $region63: #{tpu_custom_call.1} parent=43 // pred_region
          %310 = dma.done [#allocation9], 2048
        $region64: #{tpu_custom_call.1} parent=43 // pred_fallthru
          _
        %s311 = sand.u32 %s33, 1
        %s312 = scalar_lea.sflag [#allocation3], %s311
        %s313 = sand.u32 %s33, 1
        %s314 = smul.addr %s313, 8
        %s315 = scalar_lea.vmem [#allocation2], %s314
        %p316 = pneg %p46
        %p317 = pneg %p43
        %p318 = pneg %p67
        %p319 = pneg %p64
        %p320 = pneg %p88
        %p321 = pneg %p85
        %p322 = pneg %p109
        %p323 = pneg %p106
        %p324 = pneg %p130
        %p325 = pneg %p127
        %p326 = pneg %p151
        %p327 = pneg %p148
        %p328 = pneg %p177
        %p329 = pneg %p174
        %s330 = sand.u32 %s164, 1
        %s331 = scalar_lea.sflag [#allocation4], %s330
        %s332 = sand.u32 %s164, 1
        %s333 = smul.addr %s332, 8
        %s334 = scalar_lea.vmem [#allocation11], %s333
        %v335 = vld [vmem:[%s285] sm:$0xff]
        %v336 = vld [vmem:[#allocation5] sm:$0xff]
        %v337 = vld [vmem:[#allocation5 + $0x8] sm:$0xff]
        %v338 = vld [vmem:[#allocation5 + $0x10] sm:$0xff]
        %v339 = vld [vmem:[#allocation5 + $0x18] sm:$0xff]
        %v340 = vld [vmem:[#allocation5 + $0x20] sm:$0xff]
        %v341 = vld [vmem:[#allocation5 + $0x28] sm:$0xff]
        %v342 = vld [vmem:[#allocation5 + $0x30] sm:$0xff]
        %v343 = vld [vmem:[#allocation5 + $0x38] sm:$0xff]
        %v344 = vld [vmem:[#allocation5 + $0x40] sm:$0xff]
        %v345 = vld [vmem:[#allocation5 + $0x48] sm:$0xff]
        %v346 = vld [vmem:[#allocation5 + $0x50] sm:$0xff]
        %v347 = vld [vmem:[#allocation5 + $0x58] sm:$0xff]
        %v348 = vld [vmem:[#allocation5 + $0x60] sm:$0xff]
        %v349 = vld [vmem:[#allocation5 + $0x68] sm:$0xff]
        %v350 = vld [vmem:[#allocation5 + $0x70] sm:$0xff]
        %v351 = vld [vmem:[#allocation5 + $0x78] sm:$0xff]
        %v352 = vld [vmem:[%s2] sm:$0x1]
        %v354 = vperm.slane %v352, 0
        %356 = vmatpush.msra.mxu0 %v351
        %357 = vmatpush.msra.mxu0 %v350
        %358 = vmatpush.msra.mxu0 %v349
        %359 = vmatpush.msra.mxu0 %v348
        %360 = vmatpush.msra.mxu0 %v347
        %361 = vmatpush.msra.mxu0 %v346
        %362 = vmatpush.msra.mxu0 %v345
        %363 = vmatpush.msra.mxu0 %v344
        %364 = vmatpush.msra.mxu0 %v343
        %365 = vmatpush.msra.mxu0 %v342
        %366 = vmatpush.msra.mxu0 %v341
        %367 = vmatpush.msra.mxu0 %v340
        %368 = vmatpush.msra.mxu0 %v339
        %369 = vmatpush.msra.mxu0 %v338
        %370 = vmatpush.msra.mxu0 %v337
        %371 = vmatpush.msra.mxu0 %v336
        %372 = vmatmul.f32.gmra.mxu0 %v335
        %v373 = vpop.f32.mrf.mxu0
        %v374 = vadd.f32 %v354, %v373
        %375 = vdwg.mxu0
        %v376 = vmax.f32 %v374, 0.0
        %v377 = vand.u32 2147483647, %v374
        %v378 = vsub.f32 0.0, %v377
        %v379 = vmul.f32 %v378, 1.442695
        %v380 = vpow.pop %v379
        %v381 = vadd.f32 %v380, 1.0
        %v382 = vlog2.pop %v381
        %v383 = vmul.f32 %v382, 0.6931472
        %v384 = vadd.f32 %v376, %v383
        %v385 = vsub.f32 %v374, %v384
        %v386 = vsub.f32 0.0, %v384
        %v387 = vld [vmem:[#allocation7] sm:$0xff]
        %v388 = vld [vmem:[#allocation7 + $0x8] sm:$0xff]
        %v389 = vld [vmem:[#allocation7 + $0x10] sm:$0xff]
        %v390 = vld [vmem:[#allocation7 + $0x18] sm:$0xff]
        %v391 = vld [vmem:[#allocation7 + $0x20] sm:$0xff]
        %v392 = vld [vmem:[#allocation7 + $0x28] sm:$0xff]
        %v393 = vld [vmem:[#allocation7 + $0x30] sm:$0xff]
        %v394 = vld [vmem:[#allocation7 + $0x38] sm:$0xff]
        %v395 = vld [vmem:[#allocation7 + $0x40] sm:$0xff]
        %v396 = vld [vmem:[#allocation7 + $0x48] sm:$0xff]
        %v397 = vld [vmem:[#allocation7 + $0x50] sm:$0xff]
        %v398 = vld [vmem:[#allocation7 + $0x58] sm:$0xff]
        %v399 = vld [vmem:[#allocation7 + $0x60] sm:$0xff]
        %v400 = vld [vmem:[#allocation7 + $0x68] sm:$0xff]
        %v401 = vld [vmem:[#allocation7 + $0x70] sm:$0xff]
        %v402 = vld [vmem:[#allocation7 + $0x78] sm:$0xff]
        %v403 = vld [vmem:[#allocation8] sm:$0xff]
        %v404 = vld [vmem:[#allocation8 + $0x8] sm:$0xff]
        %v405 = vld [vmem:[#allocation8 + $0x10] sm:$0xff]
        %v406 = vld [vmem:[#allocation8 + $0x18] sm:$0xff]
        %v407 = vld [vmem:[#allocation8 + $0x20] sm:$0xff]
        %v408 = vld [vmem:[#allocation8 + $0x28] sm:$0xff]
        %v409 = vld [vmem:[#allocation8 + $0x30] sm:$0xff]
        %v410 = vld [vmem:[#allocation8 + $0x38] sm:$0xff]
        %v411 = vld [vmem:[#allocation8 + $0x40] sm:$0xff]
        %v412 = vld [vmem:[#allocation8 + $0x48] sm:$0xff]
        %v413 = vld [vmem:[#allocation8 + $0x50] sm:$0xff]
        %v414 = vld [vmem:[#allocation8 + $0x58] sm:$0xff]
        %v415 = vld [vmem:[#allocation8 + $0x60] sm:$0xff]
        %v416 = vld [vmem:[#allocation8 + $0x68] sm:$0xff]
        %v417 = vld [vmem:[#allocation8 + $0x70] sm:$0xff]
        %v418 = vld [vmem:[#allocation8 + $0x78] sm:$0xff]
        %419 = vmatpush.msra.mxu0 %v418
        %420 = vmatpush.msra.mxu0 %v417
        %421 = vmatpush.msra.mxu0 %v416
        %422 = vmatpush.msra.mxu0 %v415
        %423 = vmatpush.msra.mxu0 %v414
        %424 = vmatpush.msra.mxu0 %v413
        %425 = vmatpush.msra.mxu0 %v412
        %426 = vmatpush.msra.mxu0 %v411
        %427 = vmatpush.msra.mxu0 %v410
        %428 = vmatpush.msra.mxu0 %v409
        %429 = vmatpush.msra.mxu0 %v408
        %430 = vmatpush.msra.mxu0 %v407
        %431 = vmatpush.msra.mxu0 %v406
        %432 = vmatpush.msra.mxu0 %v405
        %433 = vmatpush.msra.mxu0 %v404
        %434 = vmatpush.msra.mxu0 %v403
        %435 = vmatmul.f32.gmra.mxu0 %v386
        %v436 = vpop.f32.mrf.mxu0
        %v437 = vadd.f32 0.0, %v436
        %438 = vdwg.mxu0
        %439 = vmatpush.msra.mxu0 %v402
        %440 = vmatpush.msra.mxu0 %v401
        %441 = vmatpush.msra.mxu0 %v400
        %442 = vmatpush.msra.mxu0 %v399
        %443 = vmatpush.msra.mxu0 %v398
        %444 = vmatpush.msra.mxu0 %v397
        %445 = vmatpush.msra.mxu0 %v396
        %446 = vmatpush.msra.mxu0 %v395
        %447 = vmatpush.msra.mxu0 %v394
        %448 = vmatpush.msra.mxu0 %v393
        %449 = vmatpush.msra.mxu0 %v392
        %450 = vmatpush.msra.mxu0 %v391
        %451 = vmatpush.msra.mxu0 %v390
        %452 = vmatpush.msra.mxu0 %v389
        %453 = vmatpush.msra.mxu0 %v388
        %454 = vmatpush.msra.mxu0 %v387
        %455 = vmatmul.f32.gmra.mxu0 %v385
        %v456 = vpop.f32.mrf.mxu0
        %v457 = vadd.f32 %v437, %v456
        %458 = vdwg.mxu0
        %v459 = vmul.f32 %v457, 1.442695
        %v460 = vpow.pop %v459
        %v461 = vld [vmem:[#allocation10] sm:$0xff]
        %v462 = vld [vmem:[#allocation10 + $0x8] sm:$0xff]
        %v463 = vld [vmem:[#allocation10 + $0x10] sm:$0xff]
        %v464 = vld [vmem:[#allocation10 + $0x18] sm:$0xff]
        %v465 = vld [vmem:[#allocation10 + $0x20] sm:$0xff]
        %v466 = vld [vmem:[#allocation10 + $0x28] sm:$0xff]
        %v467 = vld [vmem:[#allocation10 + $0x30] sm:$0xff]
        %v468 = vld [vmem:[#allocation10 + $0x38] sm:$0xff]
        %v469 = vld [vmem:[#allocation10 + $0x40] sm:$0xff]
        %v470 = vld [vmem:[#allocation10 + $0x48] sm:$0xff]
        %v471 = vld [vmem:[#allocation10 + $0x50] sm:$0xff]
        %v472 = vld [vmem:[#allocation10 + $0x58] sm:$0xff]
        %v473 = vld [vmem:[#allocation10 + $0x60] sm:$0xff]
        %v474 = vld [vmem:[#allocation10 + $0x68] sm:$0xff]
        %v475 = vld [vmem:[#allocation10 + $0x70] sm:$0xff]
        %v476 = vld [vmem:[#allocation10 + $0x78] sm:$0xff]
        %477 = vmatpush.msra.mxu0 %v476
        %478 = vmatpush.msra.mxu0 %v475
        %479 = vmatpush.msra.mxu0 %v474
        %480 = vmatpush.msra.mxu0 %v473
        %481 = vmatpush.msra.mxu0 %v472
        %482 = vmatpush.msra.mxu0 %v471
        %483 = vmatpush.msra.mxu0 %v470
        %484 = vmatpush.msra.mxu0 %v469
        %485 = vmatpush.msra.mxu0 %v468
        %486 = vmatpush.msra.mxu0 %v467
        %487 = vmatpush.msra.mxu0 %v466
        %488 = vmatpush.msra.mxu0 %v465
        %489 = vmatpush.msra.mxu0 %v464
        %490 = vmatpush.msra.mxu0 %v463
        %491 = vmatpush.msra.mxu0 %v462
        %492 = vmatpush.msra.mxu0 %v461
        %493 = vmatmul.f32.gmra.mxu0 %v460
        %v494 = vpop.f32.mrf.mxu0
        %v495 = vadd.f32 0.0, %v494
        %496 = vdwg.mxu0
        %497 = vst [vmem:[%s334] sm:$0xff] %v495
        %s498 = sand.u32 %s164, 1
        %s499 = scalar_lea.sflag [#allocation4], %s498
        %s500 = sand.u32 %s164, 1
        %s501 = smul.addr %s500, 8
        %s502 = scalar_lea.vmem [#allocation11], %s501
        // Predicated region
        $region65: #{tpu_custom_call.1} parent=43 // pred_check
          %p503 = pneg %p174
        $region66: #{tpu_custom_call.1} parent=43 // pred_check_branch
          %505 = sbr.rel (%p503) target = $region68
        $region67: #{tpu_custom_call.1} parent=43 // pred_region
          %507 = vsyncadd %s499, 0
          %s508 = smul.addr %s25, 8
          %s509 = scalar_lea.hbm %s6, %s508
          %s511 = sshll.u32 %s502, 4
          %s512 = int_to_ptr.vmem [resolvable:$true] %s511
          %s513 = sshll.u32 %s509, 4
          %s514 = int_to_ptr.hbm [resolvable:$true] %s513
          %516 = dma.vmem_to_hbm [thread:$0]  %s512, 128, %s514, %s499
        $region68: #{tpu_custom_call.1} parent=43 // pred_fallthru
          _
      $region44: #{tpu_custom_call.1} parent=5 // pred_fallthru
        _
      %p517 = scmp.le.s32.totalorder 2, %s20
      // Predicated region
      $region69: #{tpu_custom_call.1} parent=5 // pred_check
        %p518 = pneg %p517
      $region70: #{tpu_custom_call.1} parent=5 // pred_check_branch
        %520 = sbr.rel (%p518) target = $region72
      $region71: #{tpu_custom_call.1} parent=5 // pred_region
        %s521 = ssub.s32 %s20, 2
        // Predicated region
        $region73: #{tpu_custom_call.1} parent=71 // pred_check
          %p522 = pneg %p180
        $region74: #{tpu_custom_call.1} parent=71 // pred_check_branch
          %524 = sbr.rel (%p522) target = $region76
        $region75: #{tpu_custom_call.1} parent=71 // pred_region
          %s525 = sand.u32 %s165, 1
          %s526 = scalar_lea.sflag [#allocation4], %s525
          %s527 = sand.u32 %s165, 1
          %s528 = smul.addr %s527, 8
          %s529 = scalar_lea.vmem [#allocation11], %s528
          %531 = dma.done %s526, 128
        $region76: #{tpu_custom_call.1} parent=71 // pred_fallthru
          _
      $region72: #{tpu_custom_call.1} parent=5 // pred_fallthru
        _
    $region6: #{tpu_custom_call.1} parent=1 // loop_footer
      %s24 = sadd.s32 1, %s20
    $region7: #{tpu_custom_call.1} parent=1 // loop_footer_branch
      %19 = sbr.rel target = $region3
    $region8: #{tpu_custom_call.1} parent=1 // loop_exit
      _
    %532 = vsyncpa [#allocation3], 1
    %s533 = scalar_lea.sflag [#allocation3], 1
    %534 = vsyncpa %s533, 1
    %535 = vsyncpa [#allocation6], 1
    %536 = vsyncpa [#allocation9], 1
    %537 = vsyncpa [#allocation4], 1
    %s538 = scalar_lea.sflag [#allocation4], 1
    %539 = vsyncpa %s538, 1

</llo_original>
